<compile_context>
chip_gen: v5e
topology: v5e:2x2
jax: 0.10.0
libtpu: 0.0.40
codegen_flags: <defaults>
</compile_context>

<pallas_src>
import math
from functools import partial

import jax
import jax.numpy as jnp
from jax.experimental import pallas as pl
from jax.experimental.pallas import tpu as pltpu


def _hash_u32(x):
    """Murmur3-style 32-bit finalizer; decorrelates sequential counters."""
    x = x * jnp.uint32(0x9E3779B1)
    x = x ^ (x >> 16)
    x = x * jnp.uint32(0x85EBCA6B)
    x = x ^ (x >> 13)
    x = x * jnp.uint32(0xC2B2AE35)
    x = x ^ (x >> 16)
    return x


def _pe_add_dropout_kernel(x_ref, pe_ref, o_ref, *, dropout_p, training, seed, n_cols):
    # x_ref:  (TB, TN) tile of the flattened (B, L*D) input
    # pe_ref: (1, TN) tile of the flattened PE row (broadcast over rows, resident
    #         across the row-tile grid axis since its index_map ignores it)
    y = x_ref[...] + pe_ref[...]          # native dtype: bf16 stays bf16 (v6e/v7x VPU)

    if training and dropout_p > 0.0:
        if dropout_p >= 1.0:
            y = jnp.zeros_like(y)
        else:
            keep_prob = 1.0 - dropout_p
            tb, tn = x_ref.shape
            # Global element coordinates -> mask is identical regardless of tiling,
            # and never repeats across row/column tiles.
            rows = jax.lax.broadcasted_iota(jnp.int32, (tb, tn), 0) + pl.program_id(0) * tb
            cols = jax.lax.broadcasted_iota(jnp.int32, (tb, tn), 1) + pl.program_id(1) * tn
            idx = (rows * n_cols + cols).astype(jnp.uint32)
            bits = _hash_u32(idx + jnp.uint32((seed * 0x9E3779B9) & 0xFFFFFFFF))
            # Integer-threshold compare: no >>8 / int->float convert / float uniform.
            thr = jnp.uint32(min(int(round(keep_prob * 4294967296.0)), 0xFFFFFFFF))
            keep = bits < thr
            scale = jnp.asarray(1.0 / keep_prob, dtype=y.dtype)
            y = jnp.where(keep, y * scale, jnp.zeros_like(y))

    o_ref[...] = y.astype(o_ref.dtype)


def _pick_tiles(B, N, itemsize):
    """(8,128)-legal tiles, ~1 MiB per x block (v7x/v5e VMEM-safe, near HBM roofline)."""
    target_elems = max(1024, (1 << 20) // itemsize)
    if B * N <= target_elems:
        return B, N                                      # whole array in one block
    if 8 * N <= target_elems:
        tn = N                                           # full (legal) last dim
        tb = max(8, ((target_elems // N) // 8) * 8)      # multiple of 8
    else:
        tn = max(128, ((target_elems // 8) // 128) * 128)  # multiple of 128, < N
        tb = B if B < 8 else 8                           # full B or multiple of 8
    return tb, tn


def make_positional_encoding(seq_length: int, d_model: int, dtype=jnp.float32):
    """Build the (1, seq_length, d_model) sinusoidal PE buffer in the target dtype."""
    # TODO(synk): the reference __init__ uses torch.arange(0, seq_length - 1) for
    # `position`, which shape-mismatches the buffer (and raises) for seq_length > 2;
    # we build the evidently-intended full-length sinusoidal table instead.
    position = jnp.arange(seq_length, dtype=jnp.float32)[:, None]                  # (S, 1)
    div_term = jnp.exp(
        jnp.arange(0, d_model, 2, dtype=jnp.float32) * (-math.log(10000.0) / d_model)
    )                                                                              # (ceil(D/2),)
    ang = position * div_term                                                      # (S, ceil(D/2))
    pe = jnp.zeros((seq_length, d_model), jnp.float32)
    pe = pe.at[:, 0::2].set(jnp.sin(ang))
    pe = pe.at[:, 1::2].set(jnp.cos(ang)[:, : d_model // 2])                       # odd-D safe
    return pe[None, :, :].astype(dtype)                                            # (1, S, D)


def positional_encoding_forward(x, pe, *, dropout_p=0.1, training=False, seed=0):
    """x: (B, L, D); pe: (1, S, D) with S >= L. Returns dropout(x + pe[:, :L, :])."""
    B, L, D = x.shape
    S = pe.shape[1]
    assert pe.shape == (1, S, D), f"pe shape {pe.shape} incompatible with d_model={D}"
    assert L <= S, f"sequence length {L} exceeds positional-encoding length {S}"

    if pe.dtype != x.dtype:
        pe = pe.astype(x.dtype)           # keep the kernel compute in the native dtype

    N = L * D
    x2 = x.reshape(B, N)                  # lane-dense 2D slab
    pe2 = pe.reshape(1, S * D)
    if S != L:
        pe2 = pe2[:, :N]                  # contiguous prefix; no-op when S == L

    TB, TN = _pick_tiles(B, N, jnp.dtype(x.dtype).itemsize)
    grid = (pl.cdiv(B, TB), pl.cdiv(N, TN))

    kernel = partial(_pe_add_dropout_kernel, dropout_p=float(dropout_p),
                     training=bool(training), seed=int(seed), n_cols=N)

    out2 = pl.pallas_call(
        kernel,
        out_shape=jax.ShapeDtypeStruct((B, N), x.dtype),
        grid_spec=pltpu.PrefetchScalarGridSpec(
            num_scalar_prefetch=0,
            grid=grid,
            in_specs=[
                pl.BlockSpec((TB, TN), lambda i, j: (i, j)),   # x tile
                pl.BlockSpec((1, TN), lambda i, j: (0, j)),    # pe row, constant over i
            ],
            out_specs=pl.BlockSpec((TB, TN), lambda i, j: (i, j)),
        ),
        compiler_params=pltpu.CompilerParams(
            dimension_semantics=("parallel", "parallel")),
    )(x2, pe2)
    return out2.reshape(B, L, D)


if __name__ == "__main__":
    # Small shapes consistent with the module: batch=2, seq=8, d_model=32.
    d_model, seq_length, dropout_p = 32, 8, 0.1
    B, L = 2, 8

    key = jax.random.PRNGKey(0)
    x = jax.random.normal(key, (B, L, d_model), dtype=jnp.float32)
    pe = make_positional_encoding(seq_length, d_model, dtype=x.dtype)

    # Eval-mode forward (dropout is identity), matching module.eval() semantics.
    out = jax.block_until_ready(
        positional_encoding_forward(x, pe, dropout_p=dropout_p, training=False))
    ref = x + pe[:, :L, :]
    assert out.shape == (B, L, d_model)
    assert jnp.allclose(out, ref, atol=1e-6, rtol=1e-6)

    # Training-mode forward: fused inverted dropout (in-kernel hash RNG).
    out_tr = jax.block_until_ready(
        positional_encoding_forward(x, pe, dropout_p=dropout_p, training=True, seed=123))
    keep_scale = 1.0 / (1.0 - dropout_p)
    ok = jnp.isclose(out_tr, 0.0) | jnp.isclose(out_tr, ref * keep_scale,
                                                atol=1e-5, rtol=1e-5)
    assert out_tr.shape == (B, L, d_model)
    assert bool(jnp.all(ok))

    print("KERNEL_OK")
</pallas_src>

<mosaic_0001>
module attributes {stable_mosaic.version = 11 : i64} {
  func.func @_pe_add_dropout_kernel(%arg0: i32, %arg1: i32, %arg2: memref<2x256xf32, #tpu.memory_space<vmem>>, %arg3: memref<1x256xf32, #tpu.memory_space<vmem>>, %arg4: memref<2x256xf32, #tpu.memory_space<vmem>>) attributes {dimension_semantics = [#tpu.dimension_semantics<parallel>, #tpu.dimension_semantics<parallel>], iteration_bounds = array<i64: 1, 1>, scalar_prefetch = 0 : i64, scratch_operands = 0 : i64, tpu.core_type = #tpu.core_type<tc>, window_params = [{transform_indices = @transform_0, window_bounds = array<i64: 2, 256>}, {transform_indices = @transform_1, window_bounds = array<i64: 1, 256>}, {transform_indices = @transform_2, window_bounds = array<i64: 2, 256>}]} {
    %c0 = arith.constant 0 : index
    %c0_0 = arith.constant 0 : index
    %0 = vector.load %arg2[%c0, %c0_0] : memref<2x256xf32, #tpu.memory_space<vmem>>, vector<2x256xf32>
    %c0_1 = arith.constant 0 : index
    %c0_2 = arith.constant 0 : index
    %1 = vector.load %arg3[%c0_1, %c0_2] : memref<1x256xf32, #tpu.memory_space<vmem>>, vector<1x256xf32>
    %2 = vector.broadcast %1 : vector<1x256xf32> to vector<2x256xf32>
    %3 = arith.addf %0, %2 : vector<2x256xf32>
    %c0_3 = arith.constant 0 : index
    %c0_4 = arith.constant 0 : index
    %4 = vector.load %arg4[%c0_3, %c0_4] : memref<2x256xf32, #tpu.memory_space<vmem>>, vector<2x256xf32>
    tpu.vector_store %arg4[%c0_3, %c0_4], %3 {strides = array<i32>} : memref<2x256xf32, #tpu.memory_space<vmem>>, vector<2x256xf32>,
    return
  }
  func.func @transform_0(%arg0: i32, %arg1: i32) -> (i32, i32) {
    %c0_i32 = arith.constant 0 : i32
    return %arg0, %arg1 : i32, i32
  }
  func.func @transform_1(%arg0: i32, %arg1: i32) -> (i32, i32) {
    %c0_i32 = arith.constant 0 : i32
    %c0_i32_0 = arith.constant 0 : i32
    return %c0_i32, %arg1 : i32, i32
  }
  func.func @transform_2(%arg0: i32, %arg1: i32) -> (i32, i32) {
    %c0_i32 = arith.constant 0 : i32
    return %arg0, %arg1 : i32, i32
  }
}

</mosaic_0001>

<llo_original>
// kernel: tpu_custom_call.1
$region0: #{tpu_custom_call.1}
  #allocation0 [shape = 'u32[]', space=smem, size = 0x4, offset = 0x4, fixed_abs, tag = 'smem constant byte address 0x4 - core index']
  #allocation1 [shape = 'u32[72,128]{1,0:T(1,128)}', space=vmem, size = 0x9000, scoped, tag = 'internal scratch']
  %s0 = inlined_call_operand.hbm [shape: f32[2,256], index: 0, kind: input, shape index: {}]
  %s1 = inlined_call_operand.hbm [shape: f32[1,256], index: 1, kind: input, shape index: {}]
  %s2 = inlined_call_operand.hbm [shape: f32[2,256], index: 2, kind: output, shape index: {}]
  %s3 = sld [smem:[#allocation0]]
  $region26: #{tpu_custom_call.1} parent=0
    _
  %s5 = ssub.s32 1, %s3
  %s6 = scalar_select 0, %s5, %s3
  $region1: #{tpu_custom_call.1} parent=0
    #allocation2 [shape = 'u8[2048]{0}', space=vmem, size = 0x800, scoped, tag = 'input window, operand 0, single buffered']
    #allocation3 [shape = 's32[1]{0}', space=sflag, size = 0x4, scoped, tag = 'scoped memory for tpu_custom_call.1']
    #allocation4 [shape = 's32[1]{0}', space=sflag, size = 0x4, scoped, tag = 'scoped memory for tpu_custom_call.1']
    #allocation5 [shape = 'u8[1024]{0}', space=vmem, size = 0x400, scoped, tag = 'input window, operand 1, single buffered']
    #allocation6 [shape = 's32[1]{0}', space=sflag, size = 0x4, scoped, tag = 'scoped memory for tpu_custom_call.1']
    #allocation7 [shape = 'u8[2048]{0}', space=vmem, size = 0x800, scoped, tag = 'output window, operand 0, single buffered']
    %7 = vsyncpa [#allocation3], 0
    %8 = vsyncpa [#allocation6], 0
    %9 = vsyncpa [#allocation4], 0
    // Predicated region
    $region2: #{tpu_custom_call.1} parent=1 // pred_check
      _
    $region3: #{tpu_custom_call.1} parent=1 // pred_check_branch
      %11 = sbr.rel (0) target = $region5
    $region4: #{tpu_custom_call.1} parent=1 // pred_region
      %13 = vsyncadd [#allocation3], 0
      %s15 = sshll.u32 %s0, 4
      %s16 = int_to_ptr.hbm [resolvable:$true] %s15
      %s17 = sshll.u32 [#allocation2], 4
      %s18 = int_to_ptr.vmem [resolvable:$true] %s17
      %20 = dma.hbm_to_vmem [thread:$0]  %s16, 64, %s18, [#allocation3]
    $region5: #{tpu_custom_call.1} parent=1 // pred_fallthru
      _
    // Predicated region
    $region6: #{tpu_custom_call.1} parent=1 // pred_check
      _
    $region7: #{tpu_custom_call.1} parent=1 // pred_check_branch
      %22 = sbr.rel (0) target = $region9
    $region8: #{tpu_custom_call.1} parent=1 // pred_region
      %24 = vsyncadd [#allocation6], 0
      %s26 = sshll.u32 %s1, 4
      %s27 = int_to_ptr.hbm [resolvable:$true] %s26
      %s28 = sshll.u32 [#allocation5], 4
      %s29 = int_to_ptr.vmem [resolvable:$true] %s28
      %31 = dma.hbm_to_vmem [thread:$0]  %s27, 32, %s29, [#allocation6]
    $region9: #{tpu_custom_call.1} parent=1 // pred_fallthru
      _
    // Predicated region
    $region10: #{tpu_custom_call.1} parent=1 // pred_check
      _
    $region11: #{tpu_custom_call.1} parent=1 // pred_check_branch
      %33 = sbr.rel (0) target = $region13
    $region12: #{tpu_custom_call.1} parent=1 // pred_region
      %35 = dma.done [#allocation3], 64
    $region13: #{tpu_custom_call.1} parent=1 // pred_fallthru
      _
    // Predicated region
    $region14: #{tpu_custom_call.1} parent=1 // pred_check
      _
    $region15: #{tpu_custom_call.1} parent=1 // pred_check_branch
      %37 = sbr.rel (0) target = $region17
    $region16: #{tpu_custom_call.1} parent=1 // pred_region
      %39 = dma.done [#allocation6], 32
    $region17: #{tpu_custom_call.1} parent=1 // pred_fallthru
      _
    %v40 = vld [vmem:[#allocation2] sm:$0xf]
    %v41 = vld [vmem:[#allocation5] sm:$0x3]
    %v43 = vperm.slane %v41, 0
    %v44 = vperm.slane %v41, 1
    %v45 = vrot.slane %v44, 6
    %vm46 = vcmask 1041408
    %v47 = vsel %vm46, %v43, %v45
    %v49 = vadd.f32 %v40, %v47
    %50 = vst [vmem:[#allocation7] sm:$0xf] %v49
    // Predicated region
    $region18: #{tpu_custom_call.1} parent=1 // pred_check
      _
    $region19: #{tpu_custom_call.1} parent=1 // pred_check_branch
      %52 = sbr.rel (0) target = $region21
    $region20: #{tpu_custom_call.1} parent=1 // pred_region
      %54 = vsyncadd [#allocation4], 0
      %s56 = sshll.u32 [#allocation7], 4
      %s57 = int_to_ptr.vmem [resolvable:$true] %s56
      %s58 = sshll.u32 %s2, 4
      %s59 = int_to_ptr.hbm [resolvable:$true] %s58
      %61 = dma.vmem_to_hbm [thread:$0]  %s57, 64, %s59, [#allocation4]
    $region21: #{tpu_custom_call.1} parent=1 // pred_fallthru
      _
    // Predicated region
    $region22: #{tpu_custom_call.1} parent=1 // pred_check
      _
    $region23: #{tpu_custom_call.1} parent=1 // pred_check_branch
      %63 = sbr.rel (0) target = $region25
    $region24: #{tpu_custom_call.1} parent=1 // pred_region
      %65 = dma.done [#allocation4], 64
    $region25: #{tpu_custom_call.1} parent=1 // pred_fallthru
      _
    %66 = vsyncpa [#allocation3], 1
    %67 = vsyncpa [#allocation6], 1
    %68 = vsyncpa [#allocation4], 1

</llo_original>
